<compile_context>
chip_gen: v5e
topology: v5e:2x2
jax: 0.10.0
libtpu: 0.0.40
codegen_flags: <defaults>
</compile_context>

<pallas_src>
import jax
import jax.numpy as jnp
from jax.experimental import pallas as pl
from jax.experimental.pallas import tpu as pltpu


_IMAGENET_MEAN = (0.485, 0.456, 0.406)
_IMAGENET_STD = (0.229, 0.224, 0.225)


def _round_up(x, m):
    return ((x + m - 1) // m) * m


def _vmem_budget_and_limit():
    """Generation-aware VMEM sizing: (tile-packing budget, scoped vmem limit)."""
    cap = 64 << 20  # conservative fallback = v7x physical per-TC VMEM
    try:
        info = pltpu.get_tpu_info()
        cap = int(getattr(info, "vmem_capacity_bytes", cap)) or cap
    except Exception:
        pass
    budget = min(int(cap * 0.45), 64 << 20)   # what _choose_tk packs against
    limit = min(int(cap * 0.70), 100 << 20)   # scoped VMEM handed to Mosaic
    return max(budget, 16 << 20), max(limit, 32 << 20)


def _choose_thp(hp):
    """Output-feature tile.  Prefer >=2 blocks of >=256 lanes so the 'parallel'
    grid axis can shard the dominant wf stream across v7x's two TensorCores."""
    for t in (512, 384, 256):
        if hp % t == 0 and hp // t >= 2:
            return t
    return hp


def _choose_tk(d128, bp_budget, thp, budget_bytes):
    """K tile (multiple of 128) and K-grid extent with minimal zero padding."""
    # Per-step VMEM, double-buffered: bf16 x & wf tiles + f32 output block.
    resident = 8 * bp_budget * thp + 8 * thp + (64 << 10)
    per_col = 4 * (bp_budget + thp)     # 2 bytes * 2 buffers * (BP + THP)
    tk_max = max(128, (budget_bytes - resident) // per_col)
    tk_max = max(128, min(d128, (tk_max // 128) * 128))
    kg = -(-d128 // tk_max)                      # number of K steps
    tk = _round_up(-(-d128 // kg), 128)          # even split -> tiny padding
    return tk, kg


def _features_kernel(x_ref, wf_ref, bf_ref, h_ref):
    """h[:, j-block] = norm-folded features(x): bf16 streamed, f32 accumulated
    directly into the resident output block (no scratch accumulator)."""
    k = pl.program_id(1)

    @pl.when(k == 0)
    def _init():
        h_ref[...] = jnp.broadcast_to(bf_ref[...], h_ref.shape)

    h_ref[...] += jnp.dot(x_ref[...], wf_ref[...],
                          preferred_element_type=jnp.float32)


def _encode_decode_kernel(h_ref, we_ref, be_ref, wd_ref, bd_ref,
                          hbin_ref, hrec_ref):
    """encode: Linear+Sigmoid; decode: Linear+ReLU.  Single VMEM block, f32."""
    z = jnp.dot(h_ref[...], we_ref[...],
                preferred_element_type=jnp.float32) + be_ref[...]
    hbin = jax.nn.sigmoid(z)
    hbin_ref[...] = hbin
    r = jnp.dot(hbin, wd_ref[...],
                preferred_element_type=jnp.float32) + bd_ref[...]
    hrec_ref[...] = jnp.maximum(r, 0.0)


def prepare_params(params, input_chw, h_size, latent_size, max_batch=128):
    """One-time parameter prep (hoisted out of the per-call hot path).

    Folds the ImageNet normalization into the features weights/bias, pads all
    weights to lane-dense shapes and casts the large streamed matrix to bf16.
    Returns (padded_arrays, static_config)."""
    C, H, W = input_chw
    D = C * H * W
    wf, bf, we, be, wd, bd = [jnp.asarray(p, jnp.float32) for p in params]

    if C == 3:
        m = jnp.array(_IMAGENET_MEAN, jnp.float32)
        s = jnp.array(_IMAGENET_STD, jnp.float32)
        # norm(x) = x*(0.5/std) + (0.5-mean)/std  (per channel, elementwise)
        scale = jnp.broadcast_to((0.5 / s)[:, None, None], (C, H, W)).reshape(D)
        offset = jnp.broadcast_to(((0.5 - m) / s)[:, None, None],
                                  (C, H, W)).reshape(D)
        wf_n = wf * scale[:, None]
        bf_n = bf.reshape(1, h_size) + (offset @ wf)[None, :]
    else:
        # the torch module skips norm() entirely when C != 3
        wf_n = wf
        bf_n = bf.reshape(1, h_size)

    HP = _round_up(h_size, 128)
    LP = _round_up(latent_size, 128)
    THP = _choose_thp(HP)
    D128 = _round_up(D, 128)
    BP_budget = _round_up(max(max_batch, 16), 16)

    budget, vmem_limit = _vmem_budget_and_limit()
    TK, KG = _choose_tk(D128, BP_budget, THP, budget)
    D_pad = TK * KG

    wf_p = jnp.zeros((D_pad, HP), jnp.bfloat16).at[:D, :h_size].set(
        wf_n.astype(jnp.bfloat16))
    bf_p = jnp.zeros((1, HP), jnp.float32).at[:, :h_size].set(bf_n)
    we_p = jnp.zeros((HP, LP), jnp.float32).at[:h_size, :latent_size].set(we)
    be_p = jnp.zeros((1, LP), jnp.float32).at[:, :latent_size].set(
        be.reshape(1, latent_size))
    wd_p = jnp.zeros((LP, HP), jnp.float32).at[:latent_size, :h_size].set(wd)
    bd_p = jnp.zeros((1, HP), jnp.float32).at[:, :h_size].set(
        bd.reshape(1, h_size))

    arrays = (wf_p, bf_p, we_p, be_p, wd_p, bd_p)
    static = dict(C=C, H=H, W=W, D=D, D_pad=D_pad, TK=TK, KG=KG,
                  HP=HP, LP=LP, THP=THP, NJ=HP // THP,
                  h_size=h_size, latent_size=latent_size,
                  max_batch=max_batch, vmem_limit=vmem_limit)
    return arrays, static


def build_forward(static):
    """Builds a jitted forward(x, *prepared_arrays) -> ((htrue, hrec), hbin)."""
    D, D_pad, TK, KG = static["D"], static["D_pad"], static["TK"], static["KG"]
    HP, LP, THP, NJ = static["HP"], static["LP"], static["THP"], static["NJ"]
    h_size, latent_size = static["h_size"], static["latent_size"]
    vmem_limit = static["vmem_limit"]
    max_batch = static["max_batch"]

    @jax.jit
    def forward(x, wf_p, bf_p, we_p, be_p, wd_p, bd_p):
        B, C, H, W = x.shape
        assert C * H * W == D, "input shape does not match prepared params"
        assert B <= max_batch, "raise max_batch in prepare_params"
        # bf16 sublane quantum; callers should batch toward 128+ rows to
        # amortize the wf HBM stream (kernel is weight-stream bound at small B).
        BP = _round_up(max(B, 16), 16)

        # Row-major flatten (matches torch .view), pad, cast to bf16 stream.
        x_flat = x.reshape(B, D).astype(jnp.bfloat16)
        x_p = jnp.zeros((BP, D_pad), jnp.bfloat16).at[:B, :D].set(x_flat)

        # ---- features(x): tiled K-reduction matmul (norm already folded) ----
        htrue_p = pl.pallas_call(
            _features_kernel,
            out_shape=jax.ShapeDtypeStruct((BP, HP), jnp.float32),
            grid=(NJ, KG),
            in_specs=[
                pl.BlockSpec((BP, TK), lambda j, k: (0, k)),    # x K-slice
                pl.BlockSpec((TK, THP), lambda j, k: (k, j)),   # wf (K, j)-tile
                pl.BlockSpec((1, THP), lambda j, k: (0, j)),    # folded bias
            ],
            out_specs=pl.BlockSpec((BP, THP), lambda j, k: (0, j)),
            compiler_params=pltpu.CompilerParams(
                dimension_semantics=("parallel", "arbitrary"),
                vmem_limit_bytes=vmem_limit),
        )(x_p, wf_p, bf_p)

        # ---- encode (Linear+Sigmoid) + decode (Linear+ReLU): tiny kernel ----
        hbin_p, hrec_p = pl.pallas_call(
            _encode_decode_kernel,
            out_shape=(jax.ShapeDtypeStruct((BP, LP), jnp.float32),   # hbin
                       jax.ShapeDtypeStruct((BP, HP), jnp.float32)),  # hrec
            grid=(1,),
            in_specs=[
                pl.BlockSpec((BP, HP), lambda i: (0, 0)),
                pl.BlockSpec((HP, LP), lambda i: (0, 0)),
                pl.BlockSpec((1, LP), lambda i: (0, 0)),
                pl.BlockSpec((LP, HP), lambda i: (0, 0)),
                pl.BlockSpec((1, HP), lambda i: (0, 0)),
            ],
            out_specs=(pl.BlockSpec((BP, LP), lambda i: (0, 0)),
                       pl.BlockSpec((BP, HP), lambda i: (0, 0))),
            compiler_params=pltpu.CompilerParams(
                dimension_semantics=("arbitrary",),
                vmem_limit_bytes=vmem_limit),
        )(htrue_p, we_p, be_p, wd_p, bd_p)

        # .detach() is a no-op in the forward pass.
        htrue = htrue_p[:B, :h_size]
        hrec = hrec_p[:B, :h_size]
        hbin = hbin_p[:B, :latent_size]
        return (htrue, hrec), hbin

    return forward


def init_params(key, in_dim, h_size, latent_size):
    """Deterministic xavier-uniform-style init; weights stored as (in, out)."""
    k1, k2, k3 = jax.random.split(key, 3)

    def xavier(k, fan_in, fan_out):
        limit = jnp.sqrt(6.0 / (fan_in + fan_out))
        return jax.random.uniform(k, (fan_in, fan_out), jnp.float32, -limit, limit)

    wf = xavier(k1, in_dim, h_size)              # "features" (full-spatial conv)
    bf = jnp.zeros((1, h_size), jnp.float32)
    we = xavier(k2, h_size, latent_size)         # encode Linear
    be = jnp.zeros((1, latent_size), jnp.float32)
    wd = xavier(k3, latent_size, h_size)         # decode Linear
    bd = jnp.zeros((1, h_size), jnp.float32)
    return (wf, bf, we, be, wd, bd)


if __name__ == "__main__":
    B, C, H, W = 2, 3, 16, 16
    h_size, latent_size = 32, 32
    D = C * H * W

    key = jax.random.PRNGKey(0)
    kx, kp = jax.random.split(key)
    x = jax.random.uniform(kx, (B, C, H, W), jnp.float32, -1.0, 1.0)
    params = init_params(kp, D, h_size, latent_size)

    # One-time prep; arrays + forward are reused across calls.
    arrays, static = prepare_params(params, (C, H, W), h_size, latent_size,
                                    max_batch=16)
    forward = build_forward(static)

    (htrue, hrec), hbin = forward(x, *arrays)
    jax.block_until_ready((htrue, hrec, hbin))

    # ---- pure-JAX f32 reference (torch module semantics) ----
    wf, bf, we, be, wd, bd = params
    m = jnp.array(_IMAGENET_MEAN, jnp.float32)[:, None, None]
    s = jnp.array(_IMAGENET_STD, jnp.float32)[:, None, None]
    xr = (((x + 1.0) / 2.0) - m) / s
    hi = jax.lax.Precision.HIGHEST
    h_ref = jnp.dot(xr.reshape(B, D), wf, precision=hi) + bf
    hbin_ref = jax.nn.sigmoid(jnp.dot(h_ref, we, precision=hi) + be)
    hrec_ref = jnp.maximum(jnp.dot(hbin_ref, wd, precision=hi) + bd, 0.0)

    assert htrue.shape == (B, h_size) and hrec.shape == (B, h_size)
    assert hbin.shape == (B, latent_size)
    # bf16-streamed features weights -> loosened tolerance vs f32 reference.
    assert jnp.allclose(htrue, h_ref, atol=5e-2, rtol=5e-2)
    assert jnp.allclose(hbin, hbin_ref, atol=5e-2, rtol=5e-2)
    assert jnp.allclose(hrec, hrec_ref, atol=5e-2, rtol=5e-2)

    # Tight check against the same bf16-cast operands the kernel streams.
    sv = jnp.array(_IMAGENET_STD, jnp.float32)
    mv = jnp.array(_IMAGENET_MEAN, jnp.float32)
    scale = jnp.broadcast_to((0.5 / sv)[:, None, None], (C, H, W)).reshape(D)
    offset = jnp.broadcast_to(((0.5 - mv) / sv)[:, None, None],
                              (C, H, W)).reshape(D)
    h_tight = (jnp.dot(x.reshape(B, D).astype(jnp.bfloat16),
                       (wf * scale[:, None]).astype(jnp.bfloat16),
                       preferred_element_type=jnp.float32)
               + (offset @ wf)[None, :] + bf)
    assert jnp.allclose(htrue, h_tight, atol=2e-3, rtol=2e-3)

    print("KERNEL_OK")
</pallas_src>

<mosaic_0001>
module attributes {stable_mosaic.version = 11 : i64} {
  func.func @_features_kernel(%arg0: i32, %arg1: i32, %arg2: memref<16x768xbf16, #tpu.memory_space<vmem>>, %arg3: memref<768x128xbf16, #tpu.memory_space<vmem>>, %arg4: memref<1x128xf32, #tpu.memory_space<vmem>>, %arg5: memref<16x128xf32, #tpu.memory_space<vmem>>) attributes {dimension_semantics = [#tpu.dimension_semantics<parallel>, #tpu.dimension_semantics<arbitrary>], iteration_bounds = array<i64: 1, 1>, scalar_prefetch = 0 : i64, scratch_operands = 0 : i64, tpu.core_type = #tpu.core_type<tc>, window_params = [{transform_indices = @transform_0, window_bounds = array<i64: 16, 768>}, {transform_indices = @transform_1, window_bounds = array<i64: 768, 128>}, {transform_indices = @transform_2, window_bounds = array<i64: 1, 128>}, {transform_indices = @transform_3, window_bounds = array<i64: 16, 128>}]} {
    %c0_i32 = arith.constant 0 : i32
    %0 = arith.cmpi eq, %arg1, %c0_i32 : i32
    %1 = arith.extui %0 : i1 to i32
    %c0_i32_0 = arith.constant 0 : i32
    %2 = arith.cmpi ne, %1, %c0_i32_0 : i32
    scf.if %2 {
      %c0_8 = arith.constant 0 : index
      %c0_9 = arith.constant 0 : index
      %9 = vector.load %arg4[%c0_8, %c0_9] : memref<1x128xf32, #tpu.memory_space<vmem>>, vector<1x128xf32>
      %10 = vector.shape_cast %9 : vector<1x128xf32> to vector<1x128xf32>
      %11 = vector.broadcast %10 : vector<1x128xf32> to vector<16x128xf32>
      %c0_10 = arith.constant 0 : index
      %c0_11 = arith.constant 0 : index
      %12 = vector.load %arg5[%c0_10, %c0_11] : memref<16x128xf32, #tpu.memory_space<vmem>>, vector<16x128xf32>
      tpu.vector_store %arg5[%c0_10, %c0_11], %11 {strides = array<i32>} : memref<16x128xf32, #tpu.memory_space<vmem>>, vector<16x128xf32>,
    } else {
    }
    %c0 = arith.constant 0 : index
    %c0_1 = arith.constant 0 : index
    %3 = vector.load %arg5[%c0, %c0_1] : memref<16x128xf32, #tpu.memory_space<vmem>>, vector<16x128xf32>
    %c0_2 = arith.constant 0 : index
    %c0_3 = arith.constant 0 : index
    %4 = vector.load %arg2[%c0_2, %c0_3] : memref<16x768xbf16, #tpu.memory_space<vmem>>, vector<16x768xbf16>
    %c0_4 = arith.constant 0 : index
    %c0_5 = arith.constant 0 : index
    %5 = vector.load %arg3[%c0_4, %c0_5] : memref<768x128xbf16, #tpu.memory_space<vmem>>, vector<768x128xbf16>
    %cst = arith.constant dense<0.000000e+00> : vector<16x128xf32>
    %6 = tpu.matmul %4, %5, %cst {dimension_numbers = #tpu.dot_dimension_numbers<[1], [0], [0], [1], [0, 0, 1, 1], [], []>} : vector<16x768xbf16>, vector<768x128xbf16>, vector<16x128xf32> -> vector<16x128xf32>
    %7 = arith.addf %3, %6 : vector<16x128xf32>
    %c0_6 = arith.constant 0 : index
    %c0_7 = arith.constant 0 : index
    %8 = vector.load %arg5[%c0_6, %c0_7] : memref<16x128xf32, #tpu.memory_space<vmem>>, vector<16x128xf32>
    tpu.vector_store %arg5[%c0_6, %c0_7], %7 {strides = array<i32>} : memref<16x128xf32, #tpu.memory_space<vmem>>, vector<16x128xf32>,
    return
  }
  func.func @transform_0(%arg0: i32, %arg1: i32) -> (i32, i32) {
    %c0_i32 = arith.constant 0 : i32
    %c0_i32_0 = arith.constant 0 : i32
    return %c0_i32, %arg1 : i32, i32
  }
  func.func @transform_1(%arg0: i32, %arg1: i32) -> (i32, i32) {
    %c0_i32 = arith.constant 0 : i32
    return %arg1, %arg0 : i32, i32
  }
  func.func @transform_2(%arg0: i32, %arg1: i32) -> (i32, i32) {
    %c0_i32 = arith.constant 0 : i32
    %c0_i32_0 = arith.constant 0 : i32
    return %c0_i32, %arg0 : i32, i32
  }
  func.func @transform_3(%arg0: i32, %arg1: i32) -> (i32, i32) {
    %c0_i32 = arith.constant 0 : i32
    %c0_i32_0 = arith.constant 0 : i32
    return %c0_i32, %arg0 : i32, i32
  }
}

module attributes {stable_mosaic.version = 11 : i64} {
  func.func @_encode_decode_kernel(%arg0: i32, %arg1: memref<16x128xf32, #tpu.memory_space<vmem>>, %arg2: memref<128x128xf32, #tpu.memory_space<vmem>>, %arg3: memref<1x128xf32, #tpu.memory_space<vmem>>, %arg4: memref<128x128xf32, #tpu.memory_space<vmem>>, %arg5: memref<1x128xf32, #tpu.memory_space<vmem>>, %arg6: memref<16x128xf32, #tpu.memory_space<vmem>>, %arg7: memref<16x128xf32, #tpu.memory_space<vmem>>) attributes {dimension_semantics = [#tpu.dimension_semantics<arbitrary>], iteration_bounds = array<i64: 1>, scalar_prefetch = 0 : i64, scratch_operands = 0 : i64, tpu.core_type = #tpu.core_type<tc>, window_params = [{pipeline_mode = #tpu.pipeline_mode<synchronous>, transform_indices = @transform_0, window_bounds = array<i64: 16, 128>}, {pipeline_mode = #tpu.pipeline_mode<synchronous>, transform_indices = @transform_1, window_bounds = array<i64: 128, 128>}, {pipeline_mode = #tpu.pipeline_mode<synchronous>, transform_indices = @transform_2, window_bounds = array<i64: 1, 128>}, {pipeline_mode = #tpu.pipeline_mode<synchronous>, transform_indices = @transform_3, window_bounds = array<i64: 128, 128>}, {pipeline_mode = #tpu.pipeline_mode<synchronous>, transform_indices = @transform_4, window_bounds = array<i64: 1, 128>}, {pipeline_mode = #tpu.pipeline_mode<synchronous>, transform_indices = @transform_5, window_bounds = array<i64: 16, 128>}, {pipeline_mode = #tpu.pipeline_mode<synchronous>, transform_indices = @transform_6, window_bounds = array<i64: 16, 128>}]} {
    %c0 = arith.constant 0 : index
    %c0_0 = arith.constant 0 : index
    %0 = vector.load %arg1[%c0, %c0_0] : memref<16x128xf32, #tpu.memory_space<vmem>>, vector<16x128xf32>
    %c0_1 = arith.constant 0 : index
    %c0_2 = arith.constant 0 : index
    %1 = vector.load %arg2[%c0_1, %c0_2] : memref<128x128xf32, #tpu.memory_space<vmem>>, vector<128x128xf32>
    %cst = arith.constant dense<0.000000e+00> : vector<16x128xf32>
    %2 = tpu.matmul %0, %1, %cst {dimension_numbers = #tpu.dot_dimension_numbers<[1], [0], [0], [1], [0, 0, 1, 1], [], []>} : vector<16x128xf32>, vector<128x128xf32>, vector<16x128xf32> -> vector<16x128xf32>
    %c0_3 = arith.constant 0 : index
    %c0_4 = arith.constant 0 : index
    %3 = vector.load %arg3[%c0_3, %c0_4] : memref<1x128xf32, #tpu.memory_space<vmem>>, vector<1x128xf32>
    %4 = vector.broadcast %3 : vector<1x128xf32> to vector<16x128xf32>
    %5 = arith.addf %2, %4 : vector<16x128xf32>
    %6 = arith.negf %5 : vector<16x128xf32>
    %7 = math.exp %6 : vector<16x128xf32>
    %cst_5 = arith.constant 1.000000e+00 : f32
    %8 = vector.broadcast %cst_5 : f32 to vector<16x128xf32>
    %9 = arith.addf %8, %7 : vector<16x128xf32>
    %10 = arith.divf %8, %9 : vector<16x128xf32>
    %c0_6 = arith.constant 0 : index
    %c0_7 = arith.constant 0 : index
    %11 = vector.load %arg6[%c0_6, %c0_7] : memref<16x128xf32, #tpu.memory_space<vmem>>, vector<16x128xf32>
    tpu.vector_store %arg6[%c0_6, %c0_7], %10 {strides = array<i32>} : memref<16x128xf32, #tpu.memory_space<vmem>>, vector<16x128xf32>,
    %c0_8 = arith.constant 0 : index
    %c0_9 = arith.constant 0 : index
    %12 = vector.load %arg4[%c0_8, %c0_9] : memref<128x128xf32, #tpu.memory_space<vmem>>, vector<128x128xf32>
    %cst_10 = arith.constant dense<0.000000e+00> : vector<16x128xf32>
    %13 = tpu.matmul %10, %12, %cst_10 {dimension_numbers = #tpu.dot_dimension_numbers<[1], [0], [0], [1], [0, 0, 1, 1], [], []>} : vector<16x128xf32>, vector<128x128xf32>, vector<16x128xf32> -> vector<16x128xf32>
    %c0_11 = arith.constant 0 : index
    %c0_12 = arith.constant 0 : index
    %14 = vector.load %arg5[%c0_11, %c0_12] : memref<1x128xf32, #tpu.memory_space<vmem>>, vector<1x128xf32>
    %15 = vector.broadcast %14 : vector<1x128xf32> to vector<16x128xf32>
    %16 = arith.addf %13, %15 : vector<16x128xf32>
    %cst_13 = arith.constant 0.000000e+00 : f32
    %17 = vector.broadcast %cst_13 : f32 to vector<16x128xf32>
    %18 = arith.maximumf %16, %17 : vector<16x128xf32>
    %c0_14 = arith.constant 0 : index
    %c0_15 = arith.constant 0 : index
    %19 = vector.load %arg7[%c0_14, %c0_15] : memref<16x128xf32, #tpu.memory_space<vmem>>, vector<16x128xf32>
    tpu.vector_store %arg7[%c0_14, %c0_15], %18 {strides = array<i32>} : memref<16x128xf32, #tpu.memory_space<vmem>>, vector<16x128xf32>,
    return
  }
  func.func @transform_0(%arg0: i32) -> (i32, i32) {
    %c0_i32 = arith.constant 0 : i32
    %c0_i32_0 = arith.constant 0 : i32
    %c0_i32_1 = arith.constant 0 : i32
    return %c0_i32, %c0_i32_0 : i32, i32
  }
  func.func @transform_1(%arg0: i32) -> (i32, i32) {
    %c0_i32 = arith.constant 0 : i32
    %c0_i32_0 = arith.constant 0 : i32
    %c0_i32_1 = arith.constant 0 : i32
    return %c0_i32, %c0_i32_0 : i32, i32
  }
  func.func @transform_2(%arg0: i32) -> (i32, i32) {
    %c0_i32 = arith.constant 0 : i32
    %c0_i32_0 = arith.constant 0 : i32
    %c0_i32_1 = arith.constant 0 : i32
    return %c0_i32, %c0_i32_0 : i32, i32
  }
  func.func @transform_3(%arg0: i32) -> (i32, i32) {
    %c0_i32 = arith.constant 0 : i32
    %c0_i32_0 = arith.constant 0 : i32
    %c0_i32_1 = arith.constant 0 : i32
    return %c0_i32, %c0_i32_0 : i32, i32
  }
  func.func @transform_4(%arg0: i32) -> (i32, i32) {
    %c0_i32 = arith.constant 0 : i32
    %c0_i32_0 = arith.constant 0 : i32
    %c0_i32_1 = arith.constant 0 : i32
    return %c0_i32, %c0_i32_0 : i32, i32
  }
  func.func @transform_5(%arg0: i32) -> (i32, i32) {
    %c0_i32 = arith.constant 0 : i32
    %c0_i32_0 = arith.constant 0 : i32
    %c0_i32_1 = arith.constant 0 : i32
    return %c0_i32, %c0_i32_0 : i32, i32
  }
  func.func @transform_6(%arg0: i32) -> (i32, i32) {
    %c0_i32 = arith.constant 0 : i32
    %c0_i32_0 = arith.constant 0 : i32
    %c0_i32_1 = arith.constant 0 : i32
    return %c0_i32, %c0_i32_0 : i32, i32
  }
}

</mosaic_0001>

<llo_original>
// kernel: forward.3
$region0: #{forward.3}
  #allocation0 [shape = 'u32[]', space=smem, size = 0x4, offset = 0x4, fixed_abs, tag = 'smem constant byte address 0x4 - core index']
  #allocation1 [shape = 'u32[72,128]{1,0:T(1,128)}', space=vmem, size = 0x9000, scoped, tag = 'internal scratch']
  %s0 = inlined_call_operand.vmem [shape: f32[16,128], index: 0, kind: input, shape index: {}]
  %s1 = inlined_call_operand.vmem [shape: f32[128,128], index: 1, kind: input, shape index: {}]
  %s2 = inlined_call_operand.vmem [shape: f32[1,128], index: 2, kind: input, shape index: {}]
  %s3 = inlined_call_operand.vmem [shape: f32[128,128], index: 3, kind: input, shape index: {}]
  %s4 = inlined_call_operand.vmem [shape: f32[1,128], index: 4, kind: input, shape index: {}]
  %s5 = inlined_call_operand.vmem [shape: f32[16,128], index: 5, kind: output, shape index: {0}]
  %s6 = inlined_call_operand.vmem [shape: f32[16,128], index: 6, kind: output, shape index: {1}]
  %7 = xla_tuple %s5, %s6
  %s8 = sld [smem:[#allocation0]]
  $region38: #{forward.3} parent=0
    _
  %s10 = ssub.s32 1, %s8
  %s11 = scalar_select 0, %s10, %s8
  // Predicated region
  $region2: #{forward.3} parent=0 // pred_check
    _
  $region3: #{forward.3} parent=0 // pred_check_branch
    %13 = sbr.rel (0) target = $region5
  $region4: #{forward.3} parent=0 // pred_region
    _
  $region5: #{forward.3} parent=0 // pred_fallthru
    _
  // Predicated region
  $region6: #{forward.3} parent=0 // pred_check
    _
  $region7: #{forward.3} parent=0 // pred_check_branch
    %15 = sbr.rel (0) target = $region9
  $region8: #{forward.3} parent=0 // pred_region
    _
  $region9: #{forward.3} parent=0 // pred_fallthru
    _
  // Predicated region
  $region10: #{forward.3} parent=0 // pred_check
    _
  $region11: #{forward.3} parent=0 // pred_check_branch
    %17 = sbr.rel (0) target = $region13
  $region12: #{forward.3} parent=0 // pred_region
    _
  $region13: #{forward.3} parent=0 // pred_fallthru
    _
  // Predicated region
  $region14: #{forward.3} parent=0 // pred_check
    _
  $region15: #{forward.3} parent=0 // pred_check_branch
    %19 = sbr.rel (0) target = $region17
  $region16: #{forward.3} parent=0 // pred_region
    _
  $region17: #{forward.3} parent=0 // pred_fallthru
    _
  // Predicated region
  $region18: #{forward.3} parent=0 // pred_check
    _
  $region19: #{forward.3} parent=0 // pred_check_branch
    %21 = sbr.rel (0) target = $region21
  $region20: #{forward.3} parent=0 // pred_region
    _
  $region21: #{forward.3} parent=0 // pred_fallthru
    _
  %v22 = vld [vmem:[%s0] sm:$0xff]
  %v23 = vld [vmem:[%s0 + $0x8] sm:$0xff]
  %v24 = vld [vmem:[%s1] sm:$0xff]
  %v25 = vld [vmem:[%s1 + $0x8] sm:$0xff]
  %v26 = vld [vmem:[%s1 + $0x10] sm:$0xff]
  %v27 = vld [vmem:[%s1 + $0x18] sm:$0xff]
  %v28 = vld [vmem:[%s1 + $0x20] sm:$0xff]
  %v29 = vld [vmem:[%s1 + $0x28] sm:$0xff]
  %v30 = vld [vmem:[%s1 + $0x30] sm:$0xff]
  %v31 = vld [vmem:[%s1 + $0x38] sm:$0xff]
  %v32 = vld [vmem:[%s1 + $0x40] sm:$0xff]
  %v33 = vld [vmem:[%s1 + $0x48] sm:$0xff]
  %v34 = vld [vmem:[%s1 + $0x50] sm:$0xff]
  %v35 = vld [vmem:[%s1 + $0x58] sm:$0xff]
  %v36 = vld [vmem:[%s1 + $0x60] sm:$0xff]
  %v37 = vld [vmem:[%s1 + $0x68] sm:$0xff]
  %v38 = vld [vmem:[%s1 + $0x70] sm:$0xff]
  %v39 = vld [vmem:[%s1 + $0x78] sm:$0xff]
  %v40 = vld [vmem:[%s2] sm:$0x1]
  %v42 = vperm.slane %v40, 0
  %44 = vmatpush.msra.mxu0 %v39
  %45 = vmatpush.msra.mxu0 %v38
  %46 = vmatpush.msra.mxu0 %v37
  %47 = vmatpush.msra.mxu0 %v36
  %48 = vmatpush.msra.mxu0 %v35
  %49 = vmatpush.msra.mxu0 %v34
  %50 = vmatpush.msra.mxu0 %v33
  %51 = vmatpush.msra.mxu0 %v32
  %52 = vmatpush.msra.mxu0 %v31
  %53 = vmatpush.msra.mxu0 %v30
  %54 = vmatpush.msra.mxu0 %v29
  %55 = vmatpush.msra.mxu0 %v28
  %56 = vmatpush.msra.mxu0 %v27
  %57 = vmatpush.msra.mxu0 %v26
  %58 = vmatpush.msra.mxu0 %v25
  %59 = vmatpush.msra.mxu0 %v24
  %60 = vmatmul.f32.gmra.mxu0 %v22
  %v61 = vpop.f32.mrf.mxu0
  %v62 = vadd.f32 %v42, %v61
  %63 = vmatmul.f32.gmra.mxu0 %v23
  %v64 = vpop.f32.mrf.mxu0
  %v65 = vadd.f32 %v42, %v64
  %66 = vdwg.mxu0
  %v67 = vxor.u32 %v62, 2147483648
  %v68 = vxor.u32 %v65, 2147483648
  %v69 = vmul.f32 %v67, 1.442695
  %v70 = vpow.pop %v69
  %v71 = vmul.f32 %v68, 1.442695
  %v72 = vpow.pop %v71
  %v73 = vadd.f32 %v70, 1.0
  %v74 = vadd.f32 %v72, 1.0
  %v75 = vrcp.pop %v73
  %v76 = vmul.f32 %v73, %v75
  %v77 = vsub.f32 1.0, %v76
  %v78 = vmul.f32 %v75, %v77
  %v79 = vadd.f32 %v75, %v78
  %vm80 = vweird.f32 %v73
  %vm81 = vweird.f32 %v75
  %vm82 = vmor %vm80, %vm81
  %v83 = vsel %vm82, %v75, %v79
  %v84 = vand.u32 2147483647, %v73
  %vm85 = vcmp.eq.f32.partialorder %v84, 8.507059e+37
  %v86 = vand.u32 %v73, 2147483648
  %v87 = vor.u32 1.1754944e-38, %v86
  %v88 = vsel %vm85, %v87, %v83
  %v89 = vmul.f32 1.0, %v88
  %v90 = vrcp.pop %v74
  %v91 = vmul.f32 %v74, %v90
  %v92 = vsub.f32 1.0, %v91
  %v93 = vmul.f32 %v90, %v92
  %v94 = vadd.f32 %v90, %v93
  %vm95 = vweird.f32 %v74
  %vm96 = vweird.f32 %v90
  %vm97 = vmor %vm95, %vm96
  %v98 = vsel %vm97, %v90, %v94
  %v99 = vand.u32 2147483647, %v74
  %vm100 = vcmp.eq.f32.partialorder %v99, 8.507059e+37
  %v101 = vand.u32 %v74, 2147483648
  %v102 = vor.u32 1.1754944e-38, %v101
  %v103 = vsel %vm100, %v102, %v98
  %v104 = vmul.f32 1.0, %v103
  %105 = vst [vmem:[%s5] sm:$0xff] %v89
  %106 = vst [vmem:[%s5 + $0x8] sm:$0xff] %v104
  %v107 = vld [vmem:[%s3] sm:$0xff]
  %v108 = vld [vmem:[%s3 + $0x8] sm:$0xff]
  %v109 = vld [vmem:[%s3 + $0x10] sm:$0xff]
  %v110 = vld [vmem:[%s3 + $0x18] sm:$0xff]
  %v111 = vld [vmem:[%s3 + $0x20] sm:$0xff]
  %v112 = vld [vmem:[%s3 + $0x28] sm:$0xff]
  %v113 = vld [vmem:[%s3 + $0x30] sm:$0xff]
  %v114 = vld [vmem:[%s3 + $0x38] sm:$0xff]
  %v115 = vld [vmem:[%s3 + $0x40] sm:$0xff]
  %v116 = vld [vmem:[%s3 + $0x48] sm:$0xff]
  %v117 = vld [vmem:[%s3 + $0x50] sm:$0xff]
  %v118 = vld [vmem:[%s3 + $0x58] sm:$0xff]
  %v119 = vld [vmem:[%s3 + $0x60] sm:$0xff]
  %v120 = vld [vmem:[%s3 + $0x68] sm:$0xff]
  %v121 = vld [vmem:[%s3 + $0x70] sm:$0xff]
  %v122 = vld [vmem:[%s3 + $0x78] sm:$0xff]
  %v123 = vld [vmem:[%s4] sm:$0x1]
  %v125 = vperm.slane %v123, 0
  %127 = vmatpush.msra.mxu0 %v122
  %128 = vmatpush.msra.mxu0 %v121
  %129 = vmatpush.msra.mxu0 %v120
  %130 = vmatpush.msra.mxu0 %v119
  %131 = vmatpush.msra.mxu0 %v118
  %132 = vmatpush.msra.mxu0 %v117
  %133 = vmatpush.msra.mxu0 %v116
  %134 = vmatpush.msra.mxu0 %v115
  %135 = vmatpush.msra.mxu0 %v114
  %136 = vmatpush.msra.mxu0 %v113
  %137 = vmatpush.msra.mxu0 %v112
  %138 = vmatpush.msra.mxu0 %v111
  %139 = vmatpush.msra.mxu0 %v110
  %140 = vmatpush.msra.mxu0 %v109
  %141 = vmatpush.msra.mxu0 %v108
  %142 = vmatpush.msra.mxu0 %v107
  %143 = vmatmul.f32.gmra.mxu0 %v89
  %v144 = vpop.f32.mrf.mxu0
  %v145 = vadd.f32 %v125, %v144
  %146 = vmatmul.f32.gmra.mxu0 %v104
  %v147 = vpop.f32.mrf.mxu0
  %v148 = vadd.f32 %v125, %v147
  %149 = vdwg.mxu0
  %v150 = vmax.f32 %v145, 0.0
  %v151 = vmax.f32 %v148, 0.0
  %152 = vst [vmem:[%s6] sm:$0xff] %v150
  %153 = vst [vmem:[%s6 + $0x8] sm:$0xff] %v151
  // Predicated region
  $region22: #{forward.3} parent=0 // pred_check
    _
  $region23: #{forward.3} parent=0 // pred_check_branch
    %155 = sbr.rel (0) target = $region25
  $region24: #{forward.3} parent=0 // pred_region
    _
  $region25: #{forward.3} parent=0 // pred_fallthru
    _
  // Predicated region
  $region26: #{forward.3} parent=0 // pred_check
    _
  $region27: #{forward.3} parent=0 // pred_check_branch
    %157 = sbr.rel (0) target = $region29
  $region28: #{forward.3} parent=0 // pred_region
    _
  $region29: #{forward.3} parent=0 // pred_fallthru
    _
  // Predicated region
  $region30: #{forward.3} parent=0 // pred_check
    _
  $region31: #{forward.3} parent=0 // pred_check_branch
    %159 = sbr.rel (0) target = $region33
  $region32: #{forward.3} parent=0 // pred_region
    _
  $region33: #{forward.3} parent=0 // pred_fallthru
    _
  // Predicated region
  $region34: #{forward.3} parent=0 // pred_check
    _
  $region35: #{forward.3} parent=0 // pred_check_branch
    %161 = sbr.rel (0) target = $region37
  $region36: #{forward.3} parent=0 // pred_region
    _
  $region37: #{forward.3} parent=0 // pred_fallthru
    _

// kernel: forward.2
$region0: #{forward.2}
  #allocation0 [shape = 'u32[]', space=smem, size = 0x4, offset = 0x4, fixed_abs, tag = 'smem constant byte address 0x4 - core index']
  #allocation1 [shape = 'u32[72,128]{1,0:T(1,128)}', space=vmem, size = 0x9000, scoped, tag = 'internal scratch']
  %s0 = inlined_call_operand.vmem [shape: bf16[16,768], index: 0, kind: input, shape index: {}]
  %s1 = inlined_call_operand.hbm [shape: bf16[768,128], index: 1, kind: input, shape index: {}]
  %s2 = inlined_call_operand.hbm [shape: f32[1,128], index: 2, kind: input, shape index: {}]
  %s3 = inlined_call_operand.vmem [shape: f32[16,128], index: 3, kind: output, shape index: {}]
  %s4 = sld [smem:[#allocation0]]
  $region34: #{forward.2} parent=0
    _
  %s6 = ssub.s32 1, %s4
  %s7 = scalar_select 0, %s6, %s4
  $region1: #{forward.2} parent=0
    #allocation2 [shape = 'u8[196608]{0}', space=vmem, size = 0x30000, scoped, tag = 'input window, operand 1, single buffered']
    #allocation3 [shape = 's32[1]{0}', space=sflag, size = 0x4, scoped, tag = 'scoped memory for forward.2']
    #allocation4 [shape = 'u8[512]{0}', space=vmem, size = 0x400, scoped, tag = 'input window, operand 2, single buffered']
    #allocation5 [shape = 's32[1]{0}', space=sflag, size = 0x4, scoped, tag = 'scoped memory for forward.2']
    %8 = vsyncpa [#allocation3], 0
    %9 = vsyncpa [#allocation5], 0
    // Predicated region
    $region2: #{forward.2} parent=1 // pred_check
      _
    $region3: #{forward.2} parent=1 // pred_check_branch
      %11 = sbr.rel (0) target = $region5
    $region4: #{forward.2} parent=1 // pred_region
      _
    $region5: #{forward.2} parent=1 // pred_fallthru
      _
    // Predicated region
    $region6: #{forward.2} parent=1 // pred_check
      _
    $region7: #{forward.2} parent=1 // pred_check_branch
      %13 = sbr.rel (0) target = $region9
    $region8: #{forward.2} parent=1 // pred_region
      %15 = vsyncadd [#allocation3], 0
      %s16 = sshll.u32 %s1, 4
      %s17 = int_to_ptr.hbm [resolvable:$true] %s16
      %s18 = sshll.u32 [#allocation2], 4
      %s19 = int_to_ptr.vmem [resolvable:$true] %s18
      %24 = dma.hbm_to_vmem [thread:$0]  %s17, 6144, %s19, [#allocation3], 64, 64, 4
    $region9: #{forward.2} parent=1 // pred_fallthru
      _
    // Predicated region
    $region10: #{forward.2} parent=1 // pred_check
      _
    $region11: #{forward.2} parent=1 // pred_check_branch
      %26 = sbr.rel (0) target = $region13
    $region12: #{forward.2} parent=1 // pred_region
      %28 = vsyncadd [#allocation5], 0
      %s30 = sshll.u32 %s2, 4
      %s31 = int_to_ptr.hbm [resolvable:$true] %s30
      %s32 = sshll.u32 [#allocation4], 4
      %s33 = int_to_ptr.vmem [resolvable:$true] %s32
      %35 = dma.hbm_to_vmem [thread:$0]  %s31, 16, %s33, [#allocation5]
    $region13: #{forward.2} parent=1 // pred_fallthru
      _
    // Predicated region
    $region14: #{forward.2} parent=1 // pred_check
      _
    $region15: #{forward.2} parent=1 // pred_check_branch
      %37 = sbr.rel (0) target = $region17
    $region16: #{forward.2} parent=1 // pred_region
      %39 = dma.done [#allocation3], 6144
    $region17: #{forward.2} parent=1 // pred_fallthru
      _
    // Predicated region
    $region18: #{forward.2} parent=1 // pred_check
      _
    $region19: #{forward.2} parent=1 // pred_check_branch
      %41 = sbr.rel (0) target = $region21
    $region20: #{forward.2} parent=1 // pred_region
      %43 = dma.done [#allocation5], 16
    $region21: #{forward.2} parent=1 // pred_fallthru
      _
    %p44 = scmp.eq.s32.totalorder 0, 0
    // Predicated region
    $region22: #{forward.2} parent=1 // pred_check
      %p45 = pneg %p44
    $region23: #{forward.2} parent=1 // pred_check_branch
      %47 = sbr.rel (%p45) target = $region25
    $region24: #{forward.2} parent=1 // pred_region
      %v48 = vld [vmem:[#allocation4] sm:$0x1]
      %v50 = vperm.slane %v48, 0
      %52 = vst [vmem:[%s3] sm:$0xff] %v50
      %53 = vst [vmem:[%s3 + $0x8] sm:$0xff] %v50
    $region25: #{forward.2} parent=1 // pred_fallthru
      _
    %v54 = vld [vmem:[%s3] sm:$0xff]
    %v55 = vld [vmem:[%s3 + $0x8] sm:$0xff]
    %v56 = vld [vmem:[%s0] sm:$0xff]
    %v57 = vld [vmem:[%s0 + $0x8] sm:$0xff]
    %v58 = vld [vmem:[%s0 + $0x10] sm:$0xff]
    %v59 = vld [vmem:[%s0 + $0x18] sm:$0xff]
    %v60 = vld [vmem:[%s0 + $0x20] sm:$0xff]
    %v61 = vld [vmem:[%s0 + $0x28] sm:$0xff]
    %v62 = vld [vmem:[#allocation2] sm:$0xf]
    %v63 = vld [vmem:[#allocation2 + $0x4] sm:$0xf]
    %v64 = vld [vmem:[#allocation2 + $0x8] sm:$0xf]
    %v65 = vld [vmem:[#allocation2 + $0xc] sm:$0xf]
    %v66 = vld [vmem:[#allocation2 + $0x10] sm:$0xf]
    %v67 = vld [vmem:[#allocation2 + $0x14] sm:$0xf]
    %v68 = vld [vmem:[#allocation2 + $0x18] sm:$0xf]
    %v69 = vld [vmem:[#allocation2 + $0x1c] sm:$0xf]
    %v70 = vld [vmem:[#allocation2 + $0x20] sm:$0xf]
    %v71 = vld [vmem:[#allocation2 + $0x24] sm:$0xf]
    %v72 = vld [vmem:[#allocation2 + $0x28] sm:$0xf]
    %v73 = vld [vmem:[#allocation2 + $0x2c] sm:$0xf]
    %v74 = vld [vmem:[#allocation2 + $0x30] sm:$0xf]
    %v75 = vld [vmem:[#allocation2 + $0x34] sm:$0xf]
    %v76 = vld [vmem:[#allocation2 + $0x38] sm:$0xf]
    %v77 = vld [vmem:[#allocation2 + $0x3c] sm:$0xf]
    %v78 = vld [vmem:[#allocation2 + $0x40] sm:$0xf]
    %v79 = vld [vmem:[#allocation2 + $0x44] sm:$0xf]
    %v80 = vld [vmem:[#allocation2 + $0x48] sm:$0xf]
    %v81 = vld [vmem:[#allocation2 + $0x4c] sm:$0xf]
    %v82 = vld [vmem:[#allocation2 + $0x50] sm:$0xf]
    %v83 = vld [vmem:[#allocation2 + $0x54] sm:$0xf]
    %v84 = vld [vmem:[#allocation2 + $0x58] sm:$0xf]
    %v85 = vld [vmem:[#allocation2 + $0x5c] sm:$0xf]
    %v86 = vld [vmem:[#allocation2 + $0x60] sm:$0xf]
    %v87 = vld [vmem:[#allocation2 + $0x64] sm:$0xf]
    %v88 = vld [vmem:[#allocation2 + $0x68] sm:$0xf]
    %v89 = vld [vmem:[#allocation2 + $0x6c] sm:$0xf]
    %v90 = vld [vmem:[#allocation2 + $0x70] sm:$0xf]
    %v91 = vld [vmem:[#allocation2 + $0x74] sm:$0xf]
    %v92 = vld [vmem:[#allocation2 + $0x78] sm:$0xf]
    %v93 = vld [vmem:[#allocation2 + $0x7c] sm:$0xf]
    %v94 = vld [vmem:[#allocation2 + $0x80] sm:$0xf]
    %v95 = vld [vmem:[#allocation2 + $0x84] sm:$0xf]
    %v96 = vld [vmem:[#allocation2 + $0x88] sm:$0xf]
    %v97 = vld [vmem:[#allocation2 + $0x8c] sm:$0xf]
    %v98 = vld [vmem:[#allocation2 + $0x90] sm:$0xf]
    %v99 = vld [vmem:[#allocation2 + $0x94] sm:$0xf]
    %v100 = vld [vmem:[#allocation2 + $0x98] sm:$0xf]
    %v101 = vld [vmem:[#allocation2 + $0x9c] sm:$0xf]
    %v102 = vld [vmem:[#allocation2 + $0xa0] sm:$0xf]
    %v103 = vld [vmem:[#allocation2 + $0xa4] sm:$0xf]
    %v104 = vld [vmem:[#allocation2 + $0xa8] sm:$0xf]
    %v105 = vld [vmem:[#allocation2 + $0xac] sm:$0xf]
    %v106 = vld [vmem:[#allocation2 + $0xb0] sm:$0xf]
    %v107 = vld [vmem:[#allocation2 + $0xb4] sm:$0xf]
    %v108 = vld [vmem:[#allocation2 + $0xb8] sm:$0xf]
    %v109 = vld [vmem:[#allocation2 + $0xbc] sm:$0xf]
    %v110 = vld [vmem:[#allocation2 + $0xc0] sm:$0xf]
    %v111 = vld [vmem:[#allocation2 + $0xc4] sm:$0xf]
    %v112 = vld [vmem:[#allocation2 + $0xc8] sm:$0xf]
    %v113 = vld [vmem:[#allocation2 + $0xcc] sm:$0xf]
    %v114 = vld [vmem:[#allocation2 + $0xd0] sm:$0xf]
    %v115 = vld [vmem:[#allocation2 + $0xd4] sm:$0xf]
    %v116 = vld [vmem:[#allocation2 + $0xd8] sm:$0xf]
    %v117 = vld [vmem:[#allocation2 + $0xdc] sm:$0xf]
    %v118 = vld [vmem:[#allocation2 + $0xe0] sm:$0xf]
    %v119 = vld [vmem:[#allocation2 + $0xe4] sm:$0xf]
    %v120 = vld [vmem:[#allocation2 + $0xe8] sm:$0xf]
    %v121 = vld [vmem:[#allocation2 + $0xec] sm:$0xf]
    %v122 = vld [vmem:[#allocation2 + $0xf0] sm:$0xf]
    %v123 = vld [vmem:[#allocation2 + $0xf4] sm:$0xf]
    %v124 = vld [vmem:[#allocation2 + $0xf8] sm:$0xf]
    %v125 = vld [vmem:[#allocation2 + $0xfc] sm:$0xf]
    %v126 = vld [vmem:[#allocation2 + $0x100] sm:$0xf]
    %v127 = vld [vmem:[#allocation2 + $0x104] sm:$0xf]
    %v128 = vld [vmem:[#allocation2 + $0x108] sm:$0xf]
    %v129 = vld [vmem:[#allocation2 + $0x10c] sm:$0xf]
    %v130 = vld [vmem:[#allocation2 + $0x110] sm:$0xf]
    %v131 = vld [vmem:[#allocation2 + $0x114] sm:$0xf]
    %v132 = vld [vmem:[#allocation2 + $0x118] sm:$0xf]
    %v133 = vld [vmem:[#allocation2 + $0x11c] sm:$0xf]
    %v134 = vld [vmem:[#allocation2 + $0x120] sm:$0xf]
    %v135 = vld [vmem:[#allocation2 + $0x124] sm:$0xf]
    %v136 = vld [vmem:[#allocation2 + $0x128] sm:$0xf]
    %v137 = vld [vmem:[#allocation2 + $0x12c] sm:$0xf]
    %v138 = vld [vmem:[#allocation2 + $0x130] sm:$0xf]
    %v139 = vld [vmem:[#allocation2 + $0x134] sm:$0xf]
    %v140 = vld [vmem:[#allocation2 + $0x138] sm:$0xf]
    %v141 = vld [vmem:[#allocation2 + $0x13c] sm:$0xf]
    %v142 = vld [vmem:[#allocation2 + $0x140] sm:$0xf]
    %v143 = vld [vmem:[#allocation2 + $0x144] sm:$0xf]
    %v144 = vld [vmem:[#allocation2 + $0x148] sm:$0xf]
    %v145 = vld [vmem:[#allocation2 + $0x14c] sm:$0xf]
    %v146 = vld [vmem:[#allocation2 + $0x150] sm:$0xf]
    %v147 = vld [vmem:[#allocation2 + $0x154] sm:$0xf]
    %v148 = vld [vmem:[#allocation2 + $0x158] sm:$0xf]
    %v149 = vld [vmem:[#allocation2 + $0x15c] sm:$0xf]
    %v150 = vld [vmem:[#allocation2 + $0x160] sm:$0xf]
    %v151 = vld [vmem:[#allocation2 + $0x164] sm:$0xf]
    %v152 = vld [vmem:[#allocation2 + $0x168] sm:$0xf]
    %v153 = vld [vmem:[#allocation2 + $0x16c] sm:$0xf]
    %v154 = vld [vmem:[#allocation2 + $0x170] sm:$0xf]
    %v155 = vld [vmem:[#allocation2 + $0x174] sm:$0xf]
    %v156 = vld [vmem:[#allocation2 + $0x178] sm:$0xf]
    %v157 = vld [vmem:[#allocation2 + $0x17c] sm:$0xf]
    %v164 = vunpack.c.l.b16 %v56
    %v165 = vunpack.c.h.b16 %v56
    %v166 = vunpack.c.l.b16 %v57
    %v167 = vunpack.c.h.b16 %v57
    %v168 = vunpack.c.l.b16 %v58
    %v169 = vunpack.c.h.b16 %v58
    %v170 = vunpack.c.l.b16 %v59
    %v171 = vunpack.c.h.b16 %v59
    %v172 = vunpack.c.l.b16 %v60
    %v173 = vunpack.c.h.b16 %v60
    %v174 = vunpack.c.l.b16 %v61
    %v175 = vunpack.c.h.b16 %v61
    %v176 = vpack.c.b16 %v170, %v164
    %v177 = vpack.c.b16 %v171, %v165
    %v178 = vpack.c.b16 %v172, %v166
    %v179 = vpack.c.b16 %v173, %v167
    %v180 = vpack.c.b16 %v174, %v168
    %v181 = vpack.c.b16 %v175, %v169
    %v284 = vunpack.c.l.b16 %v62
    %v285 = vunpack.c.l.b16 %v63
    %v286 = vunpack.c.l.b16 %v64
    %v287 = vunpack.c.l.b16 %v65
    %v288 = vunpack.c.l.b16 %v66
    %v289 = vunpack.c.l.b16 %v67
    %v290 = vunpack.c.l.b16 %v68
    %v291 = vunpack.c.l.b16 %v69
    %v292 = vunpack.c.l.b16 %v70
    %v293 = vunpack.c.l.b16 %v71
    %v294 = vunpack.c.l.b16 %v72
    %v295 = vunpack.c.l.b16 %v73
    %v296 = vunpack.c.l.b16 %v74
    %v297 = vunpack.c.l.b16 %v75
    %v298 = vunpack.c.l.b16 %v76
    %v299 = vunpack.c.l.b16 %v77
    %v300 = vunpack.c.l.b16 %v78
    %v301 = vunpack.c.l.b16 %v79
    %v302 = vunpack.c.l.b16 %v80
    %v303 = vunpack.c.l.b16 %v81
    %v304 = vunpack.c.l.b16 %v82
    %v305 = vunpack.c.l.b16 %v83
    %v306 = vunpack.c.l.b16 %v84
    %v307 = vunpack.c.l.b16 %v85
    %v308 = vunpack.c.l.b16 %v86
    %v309 = vunpack.c.l.b16 %v87
    %v310 = vunpack.c.l.b16 %v88
    %v311 = vunpack.c.l.b16 %v89
    %v312 = vunpack.c.l.b16 %v90
    %v313 = vunpack.c.l.b16 %v91
    %v314 = vunpack.c.l.b16 %v92
    %v315 = vunpack.c.l.b16 %v93
    %v316 = vunpack.c.l.b16 %v94
    %v317 = vunpack.c.l.b16 %v95
    %v318 = vunpack.c.l.b16 %v96
    %v319 = vunpack.c.l.b16 %v97
    %v320 = vunpack.c.l.b16 %v98
    %v321 = vunpack.c.l.b16 %v99
    %v322 = vunpack.c.l.b16 %v100
    %v323 = vunpack.c.l.b16 %v101
    %v324 = vunpack.c.l.b16 %v102
    %v325 = vunpack.c.l.b16 %v103
    %v326 = vunpack.c.l.b16 %v104
    %v327 = vunpack.c.l.b16 %v105
    %v328 = vunpack.c.l.b16 %v106
    %v329 = vunpack.c.l.b16 %v107
    %v330 = vunpack.c.l.b16 %v108
    %v331 = vunpack.c.l.b16 %v109
    %v332 = vunpack.c.l.b16 %v110
    %v333 = vunpack.c.l.b16 %v111
    %v334 = vunpack.c.l.b16 %v112
    %v335 = vunpack.c.l.b16 %v113
    %v336 = vunpack.c.l.b16 %v114
    %v337 = vunpack.c.l.b16 %v115
    %v338 = vunpack.c.l.b16 %v116
    %v339 = vunpack.c.l.b16 %v117
    %v340 = vunpack.c.l.b16 %v118
    %v341 = vunpack.c.l.b16 %v119
    %v342 = vunpack.c.l.b16 %v120
    %v343 = vunpack.c.l.b16 %v121
    %v344 = vunpack.c.l.b16 %v122
    %v345 = vunpack.c.l.b16 %v123
    %v346 = vunpack.c.l.b16 %v124
    %v347 = vunpack.c.l.b16 %v125
    %v348 = vunpack.c.l.b16 %v126
    %v349 = vunpack.c.l.b16 %v127
    %v350 = vunpack.c.l.b16 %v128
    %v351 = vunpack.c.l.b16 %v129
    %v352 = vunpack.c.l.b16 %v130
    %v353 = vunpack.c.l.b16 %v131
    %v354 = vunpack.c.l.b16 %v132
    %v355 = vunpack.c.l.b16 %v133
    %v356 = vunpack.c.l.b16 %v134
    %v357 = vunpack.c.l.b16 %v135
    %v358 = vunpack.c.l.b16 %v136
    %v359 = vunpack.c.l.b16 %v137
    %v360 = vunpack.c.l.b16 %v138
    %v361 = vunpack.c.l.b16 %v139
    %v362 = vunpack.c.l.b16 %v140
    %v363 = vunpack.c.l.b16 %v141
    %v364 = vunpack.c.l.b16 %v142
    %v365 = vunpack.c.l.b16 %v143
    %v366 = vunpack.c.l.b16 %v144
    %v367 = vunpack.c.l.b16 %v145
    %v368 = vunpack.c.l.b16 %v146
    %v369 = vunpack.c.l.b16 %v147
    %v370 = vunpack.c.l.b16 %v148
    %v371 = vunpack.c.l.b16 %v149
    %v372 = vunpack.c.l.b16 %v150
    %v373 = vunpack.c.l.b16 %v151
    %v374 = vunpack.c.l.b16 %v152
    %v375 = vunpack.c.l.b16 %v153
    %v376 = vunpack.c.l.b16 %v154
    %v377 = vunpack.c.l.b16 %v155
    %v378 = vunpack.c.l.b16 %v156
    %v379 = vunpack.c.l.b16 %v157
    %v380 = vpack.c.b16 %v285, %v284
    %v381 = vpack.c.b16 %v287, %v286
    %v382 = vpack.c.b16 %v289, %v288
    %v383 = vpack.c.b16 %v291, %v290
    %v384 = vpack.c.b16 %v293, %v292
    %v385 = vpack.c.b16 %v295, %v294
    %v386 = vpack.c.b16 %v297, %v296
    %v387 = vpack.c.b16 %v299, %v298
    %v388 = vpack.c.b16 %v301, %v300
    %v389 = vpack.c.b16 %v303, %v302
    %v390 = vpack.c.b16 %v305, %v304
    %v391 = vpack.c.b16 %v307, %v306
    %v392 = vpack.c.b16 %v309, %v308
    %v393 = vpack.c.b16 %v311, %v310
    %v394 = vpack.c.b16 %v313, %v312
    %v395 = vpack.c.b16 %v315, %v314
    %v396 = vpack.c.b16 %v317, %v316
    %v397 = vpack.c.b16 %v319, %v318
    %v398 = vpack.c.b16 %v321, %v320
    %v399 = vpack.c.b16 %v323, %v322
    %v400 = vpack.c.b16 %v325, %v324
    %v401 = vpack.c.b16 %v327, %v326
    %v402 = vpack.c.b16 %v329, %v328
    %v403 = vpack.c.b16 %v331, %v330
    %v404 = vpack.c.b16 %v333, %v332
    %v405 = vpack.c.b16 %v335, %v334
    %v406 = vpack.c.b16 %v337, %v336
    %v407 = vpack.c.b16 %v339, %v338
    %v408 = vpack.c.b16 %v341, %v340
    %v409 = vpack.c.b16 %v343, %v342
    %v410 = vpack.c.b16 %v345, %v344
    %v411 = vpack.c.b16 %v347, %v346
    %v412 = vpack.c.b16 %v349, %v348
    %v413 = vpack.c.b16 %v351, %v350
    %v414 = vpack.c.b16 %v353, %v352
    %v415 = vpack.c.b16 %v355, %v354
    %v416 = vpack.c.b16 %v357, %v356
    %v417 = vpack.c.b16 %v359, %v358
    %v418 = vpack.c.b16 %v361, %v360
    %v419 = vpack.c.b16 %v363, %v362
    %v420 = vpack.c.b16 %v365, %v364
    %v421 = vpack.c.b16 %v367, %v366
    %v422 = vpack.c.b16 %v369, %v368
    %v423 = vpack.c.b16 %v371, %v370
    %v424 = vpack.c.b16 %v373, %v372
    %v425 = vpack.c.b16 %v375, %v374
    %v426 = vpack.c.b16 %v377, %v376
    %v427 = vpack.c.b16 %v379, %v378
    %476 = vmatpush.bf16.msra.mxu0 %v387
    %477 = vmatpush.bf16.msra.mxu0 %v386
    %478 = vmatpush.bf16.msra.mxu0 %v385
    %479 = vmatpush.bf16.msra.mxu0 %v384
    %480 = vmatpush.bf16.msra.mxu0 %v383
    %481 = vmatpush.bf16.msra.mxu0 %v382
    %482 = vmatpush.bf16.msra.mxu0 %v381
    %483 = vmatpush.bf16.msra.mxu0 %v380
    %484 = vmatmul.bf16.gmra.mxu0 %v176
    %v485 = vpop.f32.mrf.mxu0
    %v486 = vadd.f32 0.0, %v485
    %v487 = vpop.f32.mrf.mxu0
    %v488 = vadd.f32 0.0, %v487
    %489 = vdwg.mxu0
    %490 = vmatpush.bf16.msra.mxu0 %v395
    %491 = vmatpush.bf16.msra.mxu0 %v394
    %492 = vmatpush.bf16.msra.mxu0 %v393
    %493 = vmatpush.bf16.msra.mxu0 %v392
    %494 = vmatpush.bf16.msra.mxu0 %v391
    %495 = vmatpush.bf16.msra.mxu0 %v390
    %496 = vmatpush.bf16.msra.mxu0 %v389
    %497 = vmatpush.bf16.msra.mxu0 %v388
    %498 = vmatmul.bf16.gmra.mxu0 %v177
    %v499 = vpop.f32.mrf.mxu0
    %v500 = vadd.f32 %v486, %v499
    %v501 = vpop.f32.mrf.mxu0
    %v502 = vadd.f32 %v488, %v501
    %503 = vdwg.mxu0
    %504 = vmatpush.bf16.msra.mxu0 %v403
    %505 = vmatpush.bf16.msra.mxu0 %v402
    %506 = vmatpush.bf16.msra.mxu0 %v401
    %507 = vmatpush.bf16.msra.mxu0 %v400
    %508 = vmatpush.bf16.msra.mxu0 %v399
    %509 = vmatpush.bf16.msra.mxu0 %v398
    %510 = vmatpush.bf16.msra.mxu0 %v397
    %511 = vmatpush.bf16.msra.mxu0 %v396
    %512 = vmatmul.bf16.gmra.mxu0 %v178
    %v513 = vpop.f32.mrf.mxu0
    %v514 = vadd.f32 %v500, %v513
    %v515 = vpop.f32.mrf.mxu0
    %v516 = vadd.f32 %v502, %v515
    %517 = vdwg.mxu0
    %518 = vmatpush.bf16.msra.mxu0 %v411
    %519 = vmatpush.bf16.msra.mxu0 %v410
    %520 = vmatpush.bf16.msra.mxu0 %v409
    %521 = vmatpush.bf16.msra.mxu0 %v408
    %522 = vmatpush.bf16.msra.mxu0 %v407
    %523 = vmatpush.bf16.msra.mxu0 %v406
    %524 = vmatpush.bf16.msra.mxu0 %v405
    %525 = vmatpush.bf16.msra.mxu0 %v404
    %526 = vmatmul.bf16.gmra.mxu0 %v179
    %v527 = vpop.f32.mrf.mxu0
    %v528 = vadd.f32 %v514, %v527
    %v529 = vpop.f32.mrf.mxu0
    %v530 = vadd.f32 %v516, %v529
    %531 = vdwg.mxu0
    %532 = vmatpush.bf16.msra.mxu0 %v419
    %533 = vmatpush.bf16.msra.mxu0 %v418
    %534 = vmatpush.bf16.msra.mxu0 %v417
    %535 = vmatpush.bf16.msra.mxu0 %v416
    %536 = vmatpush.bf16.msra.mxu0 %v415
    %537 = vmatpush.bf16.msra.mxu0 %v414
    %538 = vmatpush.bf16.msra.mxu0 %v413
    %539 = vmatpush.bf16.msra.mxu0 %v412
    %540 = vmatmul.bf16.gmra.mxu0 %v180
    %v541 = vpop.f32.mrf.mxu0
    %v542 = vadd.f32 %v528, %v541
    %v543 = vpop.f32.mrf.mxu0
    %v544 = vadd.f32 %v530, %v543
    %545 = vdwg.mxu0
    %546 = vmatpush.bf16.msra.mxu0 %v427
    %547 = vmatpush.bf16.msra.mxu0 %v426
    %548 = vmatpush.bf16.msra.mxu0 %v425
    %549 = vmatpush.bf16.msra.mxu0 %v424
    %550 = vmatpush.bf16.msra.mxu0 %v423
    %551 = vmatpush.bf16.msra.mxu0 %v422
    %552 = vmatpush.bf16.msra.mxu0 %v421
    %553 = vmatpush.bf16.msra.mxu0 %v420
    %554 = vmatmul.bf16.gmra.mxu0 %v181
    %v555 = vpop.f32.mrf.mxu0
    %v556 = vadd.f32 %v542, %v555
    %v557 = vpop.f32.mrf.mxu0
    %v558 = vadd.f32 %v544, %v557
    %559 = vdwg.mxu0
    %v560 = vadd.f32 %v54, %v556
    %v561 = vadd.f32 %v55, %v558
    %562 = vst [vmem:[%s3] sm:$0xff] %v560
    %563 = vst [vmem:[%s3 + $0x8] sm:$0xff] %v561
    // Predicated region
    $region26: #{forward.2} parent=1 // pred_check
      _
    $region27: #{forward.2} parent=1 // pred_check_branch
      %565 = sbr.rel (0) target = $region29
    $region28: #{forward.2} parent=1 // pred_region
      _
    $region29: #{forward.2} parent=1 // pred_fallthru
      _
    // Predicated region
    $region30: #{forward.2} parent=1 // pred_check
      _
    $region31: #{forward.2} parent=1 // pred_check_branch
      %567 = sbr.rel (0) target = $region33
    $region32: #{forward.2} parent=1 // pred_region
      _
    $region33: #{forward.2} parent=1 // pred_fallthru
      _
    %568 = vsyncpa [#allocation3], 1
    %569 = vsyncpa [#allocation5], 1

</llo_original>
